<compile_context>
chip_gen: v5e
topology: v5e:2x2
jax: 0.10.0
libtpu: 0.0.40
codegen_flags: <defaults>
</compile_context>

<pallas_src>
import functools

import jax
import jax.numpy as jnp
from jax.experimental import pallas as pl
from jax.experimental.pallas import tpu as pltpu


def _identity_copy_kernel(z_star_ref, o_ref):
    # Pure copy of the parameter tile into the output tile.
    o_ref[...] = z_star_ref[...]


_SLAB_WIDTHS = (4096, 2048, 1024, 512, 256, 128)


def _plan_slab(total: int, itemsize: int) -> tuple[int, int]:
    """Pick (slab_width, pad_elems) for a lane-dense 2-D view of the table."""
    for w in _SLAB_WIDTHS:
        if total % w == 0:
            return w, 0
    # Total is not a multiple of 128: pad the flat vector in the wrapper so
    # the kernel still emits full-width unmasked stores.  Wide slab for big
    # tables, minimal 128 lanes for tiny ones (padding waste is negligible).
    w = 1024 if total * itemsize >= (8 << 20) else 128
    return w, (-total) % w


def _vmem_budget() -> tuple[int, int]:
    """(target_tile_bytes, physical_vmem_bytes) for the local TPU generation."""
    try:
        phys = int(pltpu.get_tpu_info().vmem_capacity_bytes)
    except Exception:  # defensive: older runtimes / CPU interpret
        phys = None
    if phys is not None and phys <= (64 << 20):
        # v7x-class core: 64 MiB physical VMEM -> smaller tiles, tight budget.
        return 6 << 20, phys
    if phys is None:
        phys = 128 << 20
    # v5e / v6e: 128 MiB physical; 8 MiB tiles amortize the ~0.35us step cost.
    return 8 << 20, phys


def _choose_tile_rows(n_rows: int, row_bytes: int, itemsize: int,
                      target_tile_bytes: int) -> int:
    """Multi-MiB row tiles aligned to the packed-sublane granularity."""
    packing = max(1, 4 // itemsize)   # f32 -> 1, bf16 -> 2, int8 -> 4
    row_align = 8 * packing           # sublane granularity, in rows
    table_bytes = n_rows * row_bytes
    # Multi-MiB tables always get >= 2 grid steps (v7x megacore split).
    want_split = table_bytes > (2 << 20)

    if n_rows <= row_align:
        return n_rows
    if not want_split and table_bytes <= target_tile_bytes:
        return n_rows                  # small table: one full-extent block

    tile = (target_tile_bytes // row_bytes) // row_align * row_align
    tile = max(row_align, min(tile, n_rows))

    if want_split and tile >= n_rows:
        half = (n_rows + 1) // 2
        half = ((half + row_align - 1) // row_align) * row_align
        tile = max(row_align, min(half, n_rows))
    return tile


def _block_spec(shape, index_map, buffer_count):
    """BlockSpec with optional N-deep buffering (graceful fallback)."""
    if buffer_count is not None and hasattr(pl, "Buffered"):
        try:
            return pl.BlockSpec(shape, index_map,
                                pipeline_mode=pl.Buffered(buffer_count))
        except TypeError:  # BlockSpec without pipeline_mode support
            pass
    return pl.BlockSpec(shape, index_map)


def retrofitted_embedding_forward(z_star: jax.Array,
                                  z: jax.Array | None = None,
                                  *,
                                  donate_z_star: bool = False,
                                  target_tile_bytes: int | None = None
                                  ) -> jax.Array:
    """Forward pass of RetrofittedEmbedding: returns z_star, ignoring z.

    `z` is accepted for API fidelity with the PyTorch module but (per the
    reference forward) does not participate in the computation.
    """
    del z  # unused by the reference forward

    if donate_z_star:
        # With buffer donation the caller already owns z_star's buffer; the
        # copy kernel would just be a 2x-table HBM round trip, so skip it.
        return z_star

    orig_shape = z_star.shape
    dtype = z_star.dtype
    itemsize = jnp.dtype(dtype).itemsize
    total = int(z_star.size)
    if total == 0:
        return z_star

    # Lane-dense slab: widest last dim that divides the (possibly padded)
    # element count.  Row-major reshape is free; pad/slice is wrapper-side
    # layout plumbing that keeps every store unmasked and full-width.
    d, pad = _plan_slab(total, itemsize)
    flat = z_star.reshape(-1)
    if pad:
        flat = jnp.pad(flat, (0, pad))
    n = (total + pad) // d
    x2d = flat.reshape(n, d)

    chip_tile_bytes, vmem_phys = _vmem_budget()
    if target_tile_bytes is None:
        target_tile_bytes = chip_tile_bytes

    row_bytes = d * itemsize
    tile_n = _choose_tile_rows(n, row_bytes, itemsize, target_tile_bytes)
    num_blocks = pl.cdiv(n, tile_n)

    # Third buffer only pays off when the pipeline is long enough.
    buffer_count = 3 if num_blocks >= 3 else None

    tile_bytes = tile_n * d * itemsize
    live_bytes = 2 * (buffer_count or 2) * tile_bytes       # in + out buffers
    vmem_limit = int(min(vmem_phys - (8 << 20),
                         max(32 << 20, live_bytes + (8 << 20))))

    out2d = pl.pallas_call(
        _identity_copy_kernel,
        out_shape=jax.ShapeDtypeStruct((n, d), dtype),
        grid=(num_blocks,),
        in_specs=[_block_spec((tile_n, d), lambda i: (i, 0), buffer_count)],
        out_specs=_block_spec((tile_n, d), lambda i: (i, 0), buffer_count),
        compiler_params=pltpu.CompilerParams(
            dimension_semantics=("parallel",),
            vmem_limit_bytes=vmem_limit,
        ),
        cost_estimate=pl.CostEstimate(
            flops=0,
            transcendentals=0,
            bytes_accessed=2 * n * d * itemsize),
    )(x2d)

    if pad:
        return out2d.reshape(-1)[:total].reshape(orig_shape)
    return out2d.reshape(orig_shape)


if __name__ == "__main__":
    key = jax.random.PRNGKey(0)
    k1, k2, k3, k4, k5 = jax.random.split(key, 5)

    # --- Case 1: small f32 table (the module's typical call), single block --
    num_embeddings, embed_dim = 16, 128
    z_star = jax.random.normal(k1, (num_embeddings, embed_dim), jnp.float32)
    z_in = jax.random.normal(k2, (num_embeddings, embed_dim), jnp.float32)
    out = jax.block_until_ready(retrofitted_embedding_forward(z_star, z_in))
    assert out.shape == z_star.shape and out.dtype == z_star.dtype
    assert bool(jnp.array_equal(out, z_star))

    # --- Case 2: multi-step ragged grid (cdiv tail + Buffered(3) path) ------
    z_big = jax.random.normal(k3, (1040, 128), jnp.float32)
    out_big = jax.block_until_ready(
        retrofitted_embedding_forward(z_big, None, target_tile_bytes=64 * 1024))
    assert bool(jnp.array_equal(out_big, z_big))

    # --- Case 3: bf16 with non-128 trailing dim -> wide lane-dense slab -----
    z_bf16 = jax.random.normal(k4, (16, 96), jnp.float32).astype(jnp.bfloat16)
    out_bf16 = jax.block_until_ready(retrofitted_embedding_forward(z_bf16, None))
    assert out_bf16.shape == z_bf16.shape and out_bf16.dtype == z_bf16.dtype
    assert bool(jnp.array_equal(out_bf16, z_bf16))

    # --- Case 4: ragged element count -> wrapper pad/slice, unmasked stores -
    z_rag = jax.random.normal(k5, (7, 33), jnp.float32)
    out_rag = jax.block_until_ready(retrofitted_embedding_forward(z_rag, None))
    assert out_rag.shape == z_rag.shape
    assert bool(jnp.array_equal(out_rag, z_rag))

    # --- Case 5: donated parameter -> zero-copy forward (no kernel at all) --
    @functools.partial(jax.jit, donate_argnums=(0,))
    def donated_fwd(zs, z):
        return retrofitted_embedding_forward(zs, z, donate_z_star=True)

    z_donor = jax.block_until_ready(jnp.array(z_star, copy=True))
    out_alias = jax.block_until_ready(donated_fwd(z_donor, z_in))
    assert bool(jnp.array_equal(out_alias, z_star))

    print("KERNEL_OK")
</pallas_src>

<mosaic_0001>
module attributes {stable_mosaic.version = 11 : i64} {
  func.func @_identity_copy_kernel(%arg0: i32, %arg1: memref<1x2048xf32, #tpu.memory_space<vmem>>, %arg2: memref<1x2048xf32, #tpu.memory_space<vmem>>) attributes {dimension_semantics = [#tpu.dimension_semantics<parallel>], iteration_bounds = array<i64: 1>, scalar_prefetch = 0 : i64, scratch_operands = 0 : i64, tpu.core_type = #tpu.core_type<tc>, window_params = [{transform_indices = @transform_0, window_bounds = array<i64: 1, 2048>}, {transform_indices = @transform_1, window_bounds = array<i64: 1, 2048>}]} {
    %c0 = arith.constant 0 : index
    %c0_0 = arith.constant 0 : index
    %0 = vector.load %arg1[%c0, %c0_0] : memref<1x2048xf32, #tpu.memory_space<vmem>>, vector<1x2048xf32>
    %c0_1 = arith.constant 0 : index
    %c0_2 = arith.constant 0 : index
    %1 = vector.load %arg2[%c0_1, %c0_2] : memref<1x2048xf32, #tpu.memory_space<vmem>>, vector<1x2048xf32>
    tpu.vector_store %arg2[%c0_1, %c0_2], %0 {strides = array<i32>} : memref<1x2048xf32, #tpu.memory_space<vmem>>, vector<1x2048xf32>,
    return
  }
  func.func @transform_0(%arg0: i32) -> (i32, i32) {
    %c0_i32 = arith.constant 0 : i32
    %c0_i32_0 = arith.constant 0 : i32
    return %arg0, %c0_i32 : i32, i32
  }
  func.func @transform_1(%arg0: i32) -> (i32, i32) {
    %c0_i32 = arith.constant 0 : i32
    %c0_i32_0 = arith.constant 0 : i32
    return %arg0, %c0_i32 : i32, i32
  }
}

</mosaic_0001>

<llo_original>
// kernel: tpu_custom_call.1
$region0: #{tpu_custom_call.1}
  #allocation0 [shape = 'u32[]', space=smem, size = 0x4, offset = 0x4, fixed_abs, tag = 'smem constant byte address 0x4 - core index']
  #allocation1 [shape = 'u32[72,128]{1,0:T(1,128)}', space=vmem, size = 0x9000, scoped, tag = 'internal scratch']
  %s0 = inlined_call_operand.hbm [shape: f32[1,2048], index: 0, kind: input, shape index: {}]
  %s1 = inlined_call_operand.hbm [shape: f32[1,2048], index: 1, kind: output, shape index: {}]
  %s2 = sld [smem:[#allocation0]]
  $region18: #{tpu_custom_call.1} parent=0
    _
  %s4 = ssub.s32 1, %s2
  %s5 = scalar_select 0, %s4, %s2
  $region1: #{tpu_custom_call.1} parent=0
    #allocation2 [shape = 'u8[8192]{0}', space=vmem, size = 0x2000, scoped, tag = 'input window, operand 0, single buffered']
    #allocation3 [shape = 's32[1]{0}', space=sflag, size = 0x4, scoped, tag = 'scoped memory for tpu_custom_call.1']
    #allocation4 [shape = 's32[1]{0}', space=sflag, size = 0x4, scoped, tag = 'scoped memory for tpu_custom_call.1']
    #allocation5 [shape = 'u8[8192]{0}', space=vmem, size = 0x2000, scoped, tag = 'output window, operand 0, single buffered']
    %6 = vsyncpa [#allocation3], 0
    %7 = vsyncpa [#allocation4], 0
    // Predicated region
    $region2: #{tpu_custom_call.1} parent=1 // pred_check
      _
    $region3: #{tpu_custom_call.1} parent=1 // pred_check_branch
      %9 = sbr.rel (0) target = $region5
    $region4: #{tpu_custom_call.1} parent=1 // pred_region
      %11 = vsyncadd [#allocation3], 0
      %s13 = sshll.u32 %s0, 4
      %s14 = int_to_ptr.hbm [resolvable:$true] %s13
      %s15 = sshll.u32 [#allocation2], 4
      %s16 = int_to_ptr.vmem [resolvable:$true] %s15
      %18 = dma.hbm_to_vmem [thread:$0]  %s14, 256, %s16, [#allocation3]
    $region5: #{tpu_custom_call.1} parent=1 // pred_fallthru
      _
    // Predicated region
    $region6: #{tpu_custom_call.1} parent=1 // pred_check
      _
    $region7: #{tpu_custom_call.1} parent=1 // pred_check_branch
      %20 = sbr.rel (0) target = $region9
    $region8: #{tpu_custom_call.1} parent=1 // pred_region
      %22 = dma.done [#allocation3], 256
    $region9: #{tpu_custom_call.1} parent=1 // pred_fallthru
      _
    %v23 = vld [vmem:[#allocation2] sm:$0xff]
    %v24 = vld [vmem:[#allocation2 + $0x8] sm:$0xff]
    %25 = vst [vmem:[#allocation5] sm:$0xff] %v23
    %26 = vst [vmem:[#allocation5 + $0x8] sm:$0xff] %v24
    // Predicated region
    $region10: #{tpu_custom_call.1} parent=1 // pred_check
      _
    $region11: #{tpu_custom_call.1} parent=1 // pred_check_branch
      %28 = sbr.rel (0) target = $region13
    $region12: #{tpu_custom_call.1} parent=1 // pred_region
      %30 = vsyncadd [#allocation4], 0
      %s32 = sshll.u32 [#allocation5], 4
      %s33 = int_to_ptr.vmem [resolvable:$true] %s32
      %s34 = sshll.u32 %s1, 4
      %s35 = int_to_ptr.hbm [resolvable:$true] %s34
      %37 = dma.vmem_to_hbm [thread:$0]  %s33, 256, %s35, [#allocation4]
    $region13: #{tpu_custom_call.1} parent=1 // pred_fallthru
      _
    // Predicated region
    $region14: #{tpu_custom_call.1} parent=1 // pred_check
      _
    $region15: #{tpu_custom_call.1} parent=1 // pred_check_branch
      %39 = sbr.rel (0) target = $region17
    $region16: #{tpu_custom_call.1} parent=1 // pred_region
      %41 = dma.done [#allocation4], 256
    $region17: #{tpu_custom_call.1} parent=1 // pred_fallthru
      _
    %42 = vsyncpa [#allocation3], 1
    %43 = vsyncpa [#allocation4], 1

</llo_original>
